<compile_context>
chip_gen: v5e
topology: v5e:2x2
jax: 0.10.0
libtpu: 0.0.40
codegen_flags: <defaults>
</compile_context>

<pallas_src>
import jax
import jax.numpy as jnp
from jax.experimental import pallas as pl
from jax.experimental.pallas import tpu as pltpu


def _round_up(x, m):
    return ((x + m - 1) // m) * m


# ----------------------------- fused Pallas kernel ------------------------------- #

def _fused_embed_kernel(cols_ref, wbb_ref, bbb_ref, wpj_ref, bpj_ref, o_ref):
    """One row-tile of: out = relu(cols @ Wbb + bbb) @ Wproj + bproj.

    cols_ref: (tm, K)   wbb_ref: (K, Fp)   bbb_ref: (1, Fp)
    wpj_ref:  (Fp, Ep)  bpj_ref: (1, Ep)   o_ref:   (tm, Ep)
    The (tm, Fp) feature tile lives only in registers/VMEM -- never written to HBM.
    """
    feat = jnp.dot(cols_ref[...], wbb_ref[...], preferred_element_type=jnp.float32)
    feat = jnp.maximum(feat + bbb_ref[...], 0.0)          # backbone bias + ReLU (f32)
    out = jnp.dot(feat, wpj_ref[...], preferred_element_type=jnp.float32)
    out = out + bpj_ref[...]
    o_ref[...] = out.astype(o_ref.dtype)


def _pick_tm(M, K, Fp, Ep, *, vmem_budget_bytes=24 * 1024 * 1024, tm_max=1024):
    """Largest row tile (multiple of 8, <= tm_max) whose working set fits the VMEM budget."""
    tm_cap = max(8, min(tm_max, _round_up(M, 8)))
    # Weights/biases (conservatively counted double-buffered) + per-row tile bytes:
    weight_bytes = 4 * 2 * (K * Fp + Fp * Ep + Fp + Ep)
    per_row_bytes = 4 * (2 * K + 2 * Ep + Fp)   # cols (x2 buf) + out (x2 buf) + feat scratch
    tm = tm_cap
    while tm > 8 and weight_bytes + tm * per_row_bytes > vmem_budget_bytes:
        tm = max(8, _round_up(tm // 2, 8))
    return tm


def fused_conv_relu_project(cols, w_bb_mat, b_bb, w_pj_mat, b_pj, *, out_dtype=None):
    """y[:M, :E] = relu(cols @ w_bb_mat + b_bb) @ w_pj_mat + b_pj, one fused Pallas kernel."""
    M, K = cols.shape
    Kb, F = w_bb_mat.shape
    Fw, E = w_pj_mat.shape
    assert K == Kb and F == Fw
    out_dtype = out_dtype or cols.dtype

    # Lane-dense MXU shapes: pad feature/embed dims to multiples of 128 (zeros are inert:
    # relu(0 + 0) = 0 in the padded feature columns, and the padded Wproj rows are zero).
    Fp = _round_up(F, 128)
    Ep = _round_up(E, 128)
    w_bb_p = jnp.pad(w_bb_mat.astype(jnp.float32), ((0, 0), (0, Fp - F)))
    b_bb_p = jnp.pad(b_bb.reshape(1, F).astype(jnp.float32), ((0, 0), (0, Fp - F)))
    w_pj_p = jnp.pad(w_pj_mat.astype(jnp.float32), ((0, Fp - F), (0, Ep - E)))
    b_pj_p = jnp.pad(b_pj.reshape(1, E).astype(jnp.float32), ((0, 0), (0, Ep - E)))

    # Row tiling: big, VMEM-aware tiles; pad M to a tile multiple instead of asserting divisibility.
    tm = _pick_tm(M, K, Fp, Ep)
    Mp = _round_up(M, tm)
    if Mp != M:
        cols = jnp.pad(cols, ((0, Mp - M), (0, 0)))

    flops = 2 * Mp * (K * Fp + Fp * Ep)
    bytes_accessed = 4 * (Mp * K + K * Fp + Fp * Ep + Mp * Ep + Fp + Ep)

    # TODO(synk): a bf16 cast of cols/weights (f32 accumulate) would halve HBM traffic at
    # real sizes; kept f32 here so the forward matches the f32 reference bit-tightly.
    out = pl.pallas_call(
        _fused_embed_kernel,
        out_shape=jax.ShapeDtypeStruct((Mp, Ep), out_dtype),
        grid_spec=pltpu.PrefetchScalarGridSpec(
            num_scalar_prefetch=0,
            grid=(Mp // tm,),
            in_specs=[
                pl.BlockSpec((tm, K), lambda i: (i, 0)),    # activation row tile
                pl.BlockSpec((K, Fp), lambda i: (0, 0)),    # backbone weight (resident)
                pl.BlockSpec((1, Fp), lambda i: (0, 0)),    # backbone bias (resident)
                pl.BlockSpec((Fp, Ep), lambda i: (0, 0)),   # projection weight (resident)
                pl.BlockSpec((1, Ep), lambda i: (0, 0)),    # projection bias (resident)
            ],
            out_specs=pl.BlockSpec((tm, Ep), lambda i: (i, 0)),
        ),
        compiler_params=pltpu.CompilerParams(
            dimension_semantics=("parallel",),              # row tiles shard across TCs (v7x)
            vmem_limit_bytes=32 * 1024 * 1024,              # explicit budget, fits v5e/v6e/v7x
        ),
        cost_estimate=pl.CostEstimate(
            flops=flops, transcendentals=0, bytes_accessed=bytes_accessed),
    )(cols, w_bb_p, b_bb_p, w_pj_p, b_pj_p)

    return out[:M, :E]


# ------------------------- HybridEmbed forward (JAX glue) ------------------ #

def _im2col_nhwc_3x3_s2_p1(x_nchw):
    """NCHW input -> (B*Hf*Wf, 9*C) rows in (b, hf, wf) order; columns ordered (kh, kw, c).

    Channels-last layout so C maps to lanes; odd H/W handled (Hf = (H+1)//2).
    """
    B, C, H, W = x_nchw.shape
    Hf, Wf = (H + 1) // 2, (W + 1) // 2
    x = jnp.transpose(x_nchw, (0, 2, 3, 1))                          # NHWC
    xp = jnp.pad(x, ((0, 0), (1, 1), (1, 1), (0, 0)))
    taps = []
    for kh in range(3):
        for kw in range(3):
            taps.append(xp[:, kh:kh + 2 * Hf:2, kw:kw + 2 * Wf:2, :])  # (B,Hf,Wf,C)
    cols = jnp.stack(taps, axis=3)                                   # (B, Hf, Wf, 9, C)
    cols = cols.reshape(B * Hf * Wf, 9 * C)
    return cols, (B, Hf, Wf)


def hybrid_embed_forward(x, params):
    """x: (B, in_chans, H, W) NCHW.  Returns (B, num_patches, embed_dim)."""
    w_bb, b_bb = params["w_bb"], params["b_bb"]
    w_proj, b_proj = params["w_proj"], params["b_proj"]
    C = w_bb.shape[1]
    feature_dim = w_bb.shape[0]
    embed_dim = w_proj.shape[0]

    # --- synthetic backbone (3x3 s2 p1 conv + ReLU) + HybridEmbed.proj (1x1 conv),
    #     both executed inside ONE fused Pallas matmul kernel ---
    # TODO(synk): the im2col patch extraction is still materialized by XLA in HBM (only ~9x
    # the tiny input image; the kernel output dominates HBM traffic at real sizes).
    cols, (B, Hf, Wf) = _im2col_nhwc_3x3_s2_p1(x)                          # (M, 9*C)
    w_bb_mat = jnp.transpose(w_bb, (2, 3, 1, 0)).reshape(9 * C, feature_dim)  # (9*C, F), (kh,kw,c) order
    w_pj_mat = w_proj.reshape(embed_dim, feature_dim).T                    # (F, E)

    rows = fused_conv_relu_project(cols, w_bb_mat, b_bb, w_pj_mat, b_proj)  # (M, E)

    # rows are ordered (b, hf, wf) -> identical to proj(x).flatten(2).transpose(1, 2)
    return rows.reshape(B, Hf * Wf, embed_dim)


# ------------------------------ reference --------------------------------- #

def _conv_nchw(x, w, b, stride, padding):
    y = jax.lax.conv_general_dilated(
        x, w, window_strides=stride, padding=padding,
        dimension_numbers=("NCHW", "OIHW", "NCHW"))
    return y + b[None, :, None, None]


def reference_forward(x, params):
    feat = _conv_nchw(x, params["w_bb"], params["b_bb"], (2, 2), [(1, 1), (1, 1)])
    feat = jnp.maximum(feat, 0.0)                                   # backbone ReLU
    proj = _conv_nchw(feat, params["w_proj"], params["b_proj"], (1, 1), [(0, 0), (0, 0)])
    B, E, Hf, Wf = proj.shape
    return proj.reshape(B, E, Hf * Wf).transpose(0, 2, 1)           # flatten(2).transpose(1,2)


# --------------------------------- main ------------------------------------ #

if __name__ == "__main__":
    B, in_chans, H, W = 2, 4, 16, 16
    feature_dim, embed_dim = 32, 64

    key = jax.random.PRNGKey(0)
    k1, k2, k3, k4, k5 = jax.random.split(key, 5)

    x = jax.random.normal(k1, (B, in_chans, H, W), dtype=jnp.float32)
    params = {
        "w_bb":   0.1 * jax.random.normal(k2, (feature_dim, in_chans, 3, 3), jnp.float32),
        "b_bb":   0.1 * jax.random.normal(k3, (feature_dim,), jnp.float32),
        "w_proj": 0.1 * jax.random.normal(k4, (embed_dim, feature_dim, 1, 1), jnp.float32),
        "b_proj": 0.1 * jax.random.normal(k5, (embed_dim,), jnp.float32),
    }

    out = jax.jit(hybrid_embed_forward)(x, params)
    out = jax.block_until_ready(out)

    ref = reference_forward(x, params)
    num_patches = ((H + 1) // 2) * ((W + 1) // 2)
    assert out.shape == (B, num_patches, embed_dim), out.shape
    assert jnp.allclose(out, ref, atol=1e-4, rtol=1e-4), float(jnp.max(jnp.abs(out - ref)))

    print("KERNEL_OK")
</pallas_src>

<mosaic_0001>
module attributes {stable_mosaic.version = 11 : i64} {
  func.func @_fused_embed_kernel(%arg0: i32, %arg1: memref<128x36xf32, #tpu.memory_space<vmem>>, %arg2: memref<36x128xf32, #tpu.memory_space<vmem>>, %arg3: memref<1x128xf32, #tpu.memory_space<vmem>>, %arg4: memref<128x128xf32, #tpu.memory_space<vmem>>, %arg5: memref<1x128xf32, #tpu.memory_space<vmem>>, %arg6: memref<128x128xf32, #tpu.memory_space<vmem>>) attributes {dimension_semantics = [#tpu.dimension_semantics<parallel>], iteration_bounds = array<i64: 1>, scalar_prefetch = 0 : i64, scratch_operands = 0 : i64, tpu.core_type = #tpu.core_type<tc>, window_params = [{transform_indices = @transform_0, window_bounds = array<i64: 128, 36>}, {pipeline_mode = #tpu.pipeline_mode<synchronous>, transform_indices = @transform_1, window_bounds = array<i64: 36, 128>}, {pipeline_mode = #tpu.pipeline_mode<synchronous>, transform_indices = @transform_2, window_bounds = array<i64: 1, 128>}, {pipeline_mode = #tpu.pipeline_mode<synchronous>, transform_indices = @transform_3, window_bounds = array<i64: 128, 128>}, {pipeline_mode = #tpu.pipeline_mode<synchronous>, transform_indices = @transform_4, window_bounds = array<i64: 1, 128>}, {transform_indices = @transform_5, window_bounds = array<i64: 128, 128>}]} {
    %c0 = arith.constant 0 : index
    %c0_0 = arith.constant 0 : index
    %0 = vector.load %arg1[%c0, %c0_0] : memref<128x36xf32, #tpu.memory_space<vmem>>, vector<128x36xf32>
    %c0_1 = arith.constant 0 : index
    %c0_2 = arith.constant 0 : index
    %1 = vector.load %arg2[%c0_1, %c0_2] : memref<36x128xf32, #tpu.memory_space<vmem>>, vector<36x128xf32>
    %cst = arith.constant dense<0.000000e+00> : vector<128x128xf32>
    %2 = tpu.matmul %0, %1, %cst {dimension_numbers = #tpu.dot_dimension_numbers<[1], [0], [0], [1], [0, 0, 1, 1], [], []>} : vector<128x36xf32>, vector<36x128xf32>, vector<128x128xf32> -> vector<128x128xf32>
    %c0_3 = arith.constant 0 : index
    %c0_4 = arith.constant 0 : index
    %3 = vector.load %arg3[%c0_3, %c0_4] : memref<1x128xf32, #tpu.memory_space<vmem>>, vector<1x128xf32>
    %4 = vector.broadcast %3 : vector<1x128xf32> to vector<128x128xf32>
    %5 = arith.addf %2, %4 : vector<128x128xf32>
    %cst_5 = arith.constant 0.000000e+00 : f32
    %6 = vector.broadcast %cst_5 : f32 to vector<128x128xf32>
    %7 = arith.maximumf %5, %6 : vector<128x128xf32>
    %c0_6 = arith.constant 0 : index
    %c0_7 = arith.constant 0 : index
    %8 = vector.load %arg4[%c0_6, %c0_7] : memref<128x128xf32, #tpu.memory_space<vmem>>, vector<128x128xf32>
    %cst_8 = arith.constant dense<0.000000e+00> : vector<128x128xf32>
    %9 = tpu.matmul %7, %8, %cst_8 {dimension_numbers = #tpu.dot_dimension_numbers<[1], [0], [0], [1], [0, 0, 1, 1], [], []>} : vector<128x128xf32>, vector<128x128xf32>, vector<128x128xf32> -> vector<128x128xf32>
    %c0_9 = arith.constant 0 : index
    %c0_10 = arith.constant 0 : index
    %10 = vector.load %arg5[%c0_9, %c0_10] : memref<1x128xf32, #tpu.memory_space<vmem>>, vector<1x128xf32>
    %11 = vector.broadcast %10 : vector<1x128xf32> to vector<128x128xf32>
    %12 = arith.addf %9, %11 : vector<128x128xf32>
    %c0_11 = arith.constant 0 : index
    %c0_12 = arith.constant 0 : index
    %13 = vector.load %arg6[%c0_11, %c0_12] : memref<128x128xf32, #tpu.memory_space<vmem>>, vector<128x128xf32>
    tpu.vector_store %arg6[%c0_11, %c0_12], %12 {strides = array<i32>} : memref<128x128xf32, #tpu.memory_space<vmem>>, vector<128x128xf32>,
    return
  }
  func.func @transform_0(%arg0: i32) -> (i32, i32) {
    %c0_i32 = arith.constant 0 : i32
    %c0_i32_0 = arith.constant 0 : i32
    return %arg0, %c0_i32 : i32, i32
  }
  func.func @transform_1(%arg0: i32) -> (i32, i32) {
    %c0_i32 = arith.constant 0 : i32
    %c0_i32_0 = arith.constant 0 : i32
    %c0_i32_1 = arith.constant 0 : i32
    return %c0_i32, %c0_i32_0 : i32, i32
  }
  func.func @transform_2(%arg0: i32) -> (i32, i32) {
    %c0_i32 = arith.constant 0 : i32
    %c0_i32_0 = arith.constant 0 : i32
    %c0_i32_1 = arith.constant 0 : i32
    return %c0_i32, %c0_i32_0 : i32, i32
  }
  func.func @transform_3(%arg0: i32) -> (i32, i32) {
    %c0_i32 = arith.constant 0 : i32
    %c0_i32_0 = arith.constant 0 : i32
    %c0_i32_1 = arith.constant 0 : i32
    return %c0_i32, %c0_i32_0 : i32, i32
  }
  func.func @transform_4(%arg0: i32) -> (i32, i32) {
    %c0_i32 = arith.constant 0 : i32
    %c0_i32_0 = arith.constant 0 : i32
    %c0_i32_1 = arith.constant 0 : i32
    return %c0_i32, %c0_i32_0 : i32, i32
  }
  func.func @transform_5(%arg0: i32) -> (i32, i32) {
    %c0_i32 = arith.constant 0 : i32
    %c0_i32_0 = arith.constant 0 : i32
    return %arg0, %c0_i32 : i32, i32
  }
}

</mosaic_0001>

<llo_original>
// kernel: hybrid_embed_forward.1
$region0: #{hybrid_embed_forward.1}
  #allocation0 [shape = 'u32[]', space=smem, size = 0x4, offset = 0x4, fixed_abs, tag = 'smem constant byte address 0x4 - core index']
  #allocation1 [shape = 'u32[72,128]{1,0:T(1,128)}', space=vmem, size = 0x9000, scoped, tag = 'internal scratch']
  %s0 = inlined_call_operand.vmem [shape: f32[128,36], index: 0, kind: input, shape index: {}]
  %s1 = inlined_call_operand.vmem [shape: f32[36,128], index: 1, kind: input, shape index: {}]
  %s2 = inlined_call_operand.vmem [shape: f32[1,128], index: 2, kind: input, shape index: {}]
  %s3 = inlined_call_operand.vmem [shape: f32[128,128], index: 3, kind: input, shape index: {}]
  %s4 = inlined_call_operand.vmem [shape: f32[1,128], index: 4, kind: input, shape index: {}]
  %s5 = inlined_call_operand.hbm [shape: f32[128,128], index: 5, kind: output, shape index: {}]
  %s6 = sld [smem:[#allocation0]]
  $region30: #{hybrid_embed_forward.1} parent=0
    _
  %s8 = ssub.s32 1, %s6
  %s9 = scalar_select 0, %s8, %s6
  $region1: #{hybrid_embed_forward.1} parent=0
    #allocation2 [shape = 'u8[65536]{0}', space=vmem, size = 0x10000, scoped, tag = 'output window, operand 0, single buffered']
    #allocation3 [shape = 's32[1]{0}', space=sflag, size = 0x4, scoped, tag = 'scoped memory for hybrid_embed_forward.1']
    %10 = vsyncpa [#allocation3], 0
    // Predicated region
    $region2: #{hybrid_embed_forward.1} parent=1 // pred_check
      _
    $region3: #{hybrid_embed_forward.1} parent=1 // pred_check_branch
      %12 = sbr.rel (0) target = $region5
    $region4: #{hybrid_embed_forward.1} parent=1 // pred_region
      _
    $region5: #{hybrid_embed_forward.1} parent=1 // pred_fallthru
      _
    // Predicated region
    $region6: #{hybrid_embed_forward.1} parent=1 // pred_check
      _
    $region7: #{hybrid_embed_forward.1} parent=1 // pred_check_branch
      %14 = sbr.rel (0) target = $region9
    $region8: #{hybrid_embed_forward.1} parent=1 // pred_region
      _
    $region9: #{hybrid_embed_forward.1} parent=1 // pred_fallthru
      _
    // Predicated region
    $region10: #{hybrid_embed_forward.1} parent=1 // pred_check
      _
    $region11: #{hybrid_embed_forward.1} parent=1 // pred_check_branch
      %16 = sbr.rel (0) target = $region13
    $region12: #{hybrid_embed_forward.1} parent=1 // pred_region
      _
    $region13: #{hybrid_embed_forward.1} parent=1 // pred_fallthru
      _
    // Predicated region
    $region14: #{hybrid_embed_forward.1} parent=1 // pred_check
      _
    $region15: #{hybrid_embed_forward.1} parent=1 // pred_check_branch
      %18 = sbr.rel (0) target = $region17
    $region16: #{hybrid_embed_forward.1} parent=1 // pred_region
      _
    $region17: #{hybrid_embed_forward.1} parent=1 // pred_fallthru
      _
    // Predicated region
    $region18: #{hybrid_embed_forward.1} parent=1 // pred_check
      _
    $region19: #{hybrid_embed_forward.1} parent=1 // pred_check_branch
      %20 = sbr.rel (0) target = $region21
    $region20: #{hybrid_embed_forward.1} parent=1 // pred_region
      _
    $region21: #{hybrid_embed_forward.1} parent=1 // pred_fallthru
      _
    %v21 = vld [vmem:[%s0] sm:$0xff]
    %v22 = vld [vmem:[%s0 + $0x8] sm:$0xff]
    %v23 = vld [vmem:[%s0 + $0x10] sm:$0xff]
    %v24 = vld [vmem:[%s0 + $0x18] sm:$0xff]
    %v25 = vld [vmem:[%s0 + $0x20] sm:$0xff]
    %v26 = vld [vmem:[%s0 + $0x28] sm:$0xff]
    %v27 = vld [vmem:[%s0 + $0x30] sm:$0xff]
    %v28 = vld [vmem:[%s0 + $0x38] sm:$0xff]
    %v29 = vld [vmem:[%s0 + $0x40] sm:$0xff]
    %v30 = vld [vmem:[%s0 + $0x48] sm:$0xff]
    %v31 = vld [vmem:[%s0 + $0x50] sm:$0xff]
    %v32 = vld [vmem:[%s0 + $0x58] sm:$0xff]
    %v33 = vld [vmem:[%s0 + $0x60] sm:$0xff]
    %v34 = vld [vmem:[%s0 + $0x68] sm:$0xff]
    %v35 = vld [vmem:[%s0 + $0x70] sm:$0xff]
    %v36 = vld [vmem:[%s0 + $0x78] sm:$0xff]
    %v37 = vld [vmem:[%s1] sm:$0xff]
    %v38 = vld [vmem:[%s1 + $0x8] sm:$0xff]
    %v39 = vld [vmem:[%s1 + $0x10] sm:$0xff]
    %v40 = vld [vmem:[%s1 + $0x18] sm:$0xff]
    %v41 = vld [vmem:[%s1 + $0x20] sm:$0xf]
    %v42 = vld [vmem:[%s2] sm:$0x1]
    %v44 = vperm.slane %v42, 0
    %vm46 = vcmask 293888
    %v48 = vsel %vm46, %v21, 0
    %v51 = vsel %vm46, %v22, 0
    %v54 = vsel %vm46, %v23, 0
    %v57 = vsel %vm46, %v24, 0
    %v60 = vsel %vm46, %v25, 0
    %v63 = vsel %vm46, %v26, 0
    %v66 = vsel %vm46, %v27, 0
    %v69 = vsel %vm46, %v28, 0
    %v72 = vsel %vm46, %v29, 0
    %v75 = vsel %vm46, %v30, 0
    %v78 = vsel %vm46, %v31, 0
    %v81 = vsel %vm46, %v32, 0
    %v84 = vsel %vm46, %v33, 0
    %v87 = vsel %vm46, %v34, 0
    %v90 = vsel %vm46, %v35, 0
    %v93 = vsel %vm46, %v36, 0
    %vm95 = vcmask 1043456
    %v97 = vsel %vm95, %v41, 0
    %99 = vmatpush.msra.mxu0 0.0
    %100 = vmatpush.msra.mxu0 0.0
    %101 = vmatpush.msra.mxu0 0.0
    %102 = vmatpush.msra.mxu0 0.0
    %103 = vmatpush.msra.mxu0 0.0
    %104 = vmatpush.msra.mxu0 0.0
    %105 = vmatpush.msra.mxu0 0.0
    %106 = vmatpush.msra.mxu0 0.0
    %107 = vmatpush.msra.mxu0 0.0
    %108 = vmatpush.msra.mxu0 0.0
    %109 = vmatpush.msra.mxu0 0.0
    %110 = vmatpush.msra.mxu0 %v97
    %111 = vmatpush.msra.mxu0 %v40
    %112 = vmatpush.msra.mxu0 %v39
    %113 = vmatpush.msra.mxu0 %v38
    %114 = vmatpush.msra.mxu0 %v37
    %115 = vmatmul.f32.gmra.mxu0 %v48
    %v116 = vpop.f32.mrf.mxu0
    %v117 = vadd.f32 %v44, %v116
    %118 = vmatmul.f32.gmra.mxu0 %v51
    %v119 = vpop.f32.mrf.mxu0
    %v120 = vadd.f32 %v44, %v119
    %121 = vmatmul.f32.gmra.mxu0 %v54
    %v122 = vpop.f32.mrf.mxu0
    %v123 = vadd.f32 %v44, %v122
    %124 = vmatmul.f32.gmra.mxu0 %v57
    %v125 = vpop.f32.mrf.mxu0
    %v126 = vadd.f32 %v44, %v125
    %127 = vmatmul.f32.gmra.mxu0 %v60
    %v128 = vpop.f32.mrf.mxu0
    %v129 = vadd.f32 %v44, %v128
    %130 = vmatmul.f32.gmra.mxu0 %v63
    %v131 = vpop.f32.mrf.mxu0
    %v132 = vadd.f32 %v44, %v131
    %133 = vmatmul.f32.gmra.mxu0 %v66
    %v134 = vpop.f32.mrf.mxu0
    %v135 = vadd.f32 %v44, %v134
    %136 = vmatmul.f32.gmra.mxu0 %v69
    %v137 = vpop.f32.mrf.mxu0
    %v138 = vadd.f32 %v44, %v137
    %139 = vmatmul.f32.gmra.mxu0 %v72
    %v140 = vpop.f32.mrf.mxu0
    %v141 = vadd.f32 %v44, %v140
    %142 = vmatmul.f32.gmra.mxu0 %v75
    %v143 = vpop.f32.mrf.mxu0
    %v144 = vadd.f32 %v44, %v143
    %145 = vmatmul.f32.gmra.mxu0 %v78
    %v146 = vpop.f32.mrf.mxu0
    %v147 = vadd.f32 %v44, %v146
    %148 = vmatmul.f32.gmra.mxu0 %v81
    %v149 = vpop.f32.mrf.mxu0
    %v150 = vadd.f32 %v44, %v149
    %151 = vmatmul.f32.gmra.mxu0 %v84
    %v152 = vpop.f32.mrf.mxu0
    %v153 = vadd.f32 %v44, %v152
    %154 = vmatmul.f32.gmra.mxu0 %v87
    %v155 = vpop.f32.mrf.mxu0
    %v156 = vadd.f32 %v44, %v155
    %157 = vmatmul.f32.gmra.mxu0 %v90
    %v158 = vpop.f32.mrf.mxu0
    %v159 = vadd.f32 %v44, %v158
    %160 = vmatmul.f32.gmra.mxu0 %v93
    %v161 = vpop.f32.mrf.mxu0
    %v162 = vadd.f32 %v44, %v161
    %163 = vdwg.mxu0
    %v164 = vmax.f32 %v117, 0.0
    %v165 = vmax.f32 %v120, 0.0
    %v166 = vmax.f32 %v123, 0.0
    %v167 = vmax.f32 %v126, 0.0
    %v168 = vmax.f32 %v129, 0.0
    %v169 = vmax.f32 %v132, 0.0
    %v170 = vmax.f32 %v135, 0.0
    %v171 = vmax.f32 %v138, 0.0
    %v172 = vmax.f32 %v141, 0.0
    %v173 = vmax.f32 %v144, 0.0
    %v174 = vmax.f32 %v147, 0.0
    %v175 = vmax.f32 %v150, 0.0
    %v176 = vmax.f32 %v153, 0.0
    %v177 = vmax.f32 %v156, 0.0
    %v178 = vmax.f32 %v159, 0.0
    %v179 = vmax.f32 %v162, 0.0
    %v180 = vld [vmem:[%s3] sm:$0xff]
    %v181 = vld [vmem:[%s3 + $0x8] sm:$0xff]
    %v182 = vld [vmem:[%s3 + $0x10] sm:$0xff]
    %v183 = vld [vmem:[%s3 + $0x18] sm:$0xff]
    %v184 = vld [vmem:[%s3 + $0x20] sm:$0xff]
    %v185 = vld [vmem:[%s3 + $0x28] sm:$0xff]
    %v186 = vld [vmem:[%s3 + $0x30] sm:$0xff]
    %v187 = vld [vmem:[%s3 + $0x38] sm:$0xff]
    %v188 = vld [vmem:[%s3 + $0x40] sm:$0xff]
    %v189 = vld [vmem:[%s3 + $0x48] sm:$0xff]
    %v190 = vld [vmem:[%s3 + $0x50] sm:$0xff]
    %v191 = vld [vmem:[%s3 + $0x58] sm:$0xff]
    %v192 = vld [vmem:[%s3 + $0x60] sm:$0xff]
    %v193 = vld [vmem:[%s3 + $0x68] sm:$0xff]
    %v194 = vld [vmem:[%s3 + $0x70] sm:$0xff]
    %v195 = vld [vmem:[%s3 + $0x78] sm:$0xff]
    %v196 = vld [vmem:[%s4] sm:$0x1]
    %v198 = vperm.slane %v196, 0
    %200 = vmatpush.msra.mxu0 %v195
    %201 = vmatpush.msra.mxu0 %v194
    %202 = vmatpush.msra.mxu0 %v193
    %203 = vmatpush.msra.mxu0 %v192
    %204 = vmatpush.msra.mxu0 %v191
    %205 = vmatpush.msra.mxu0 %v190
    %206 = vmatpush.msra.mxu0 %v189
    %207 = vmatpush.msra.mxu0 %v188
    %208 = vmatpush.msra.mxu0 %v187
    %209 = vmatpush.msra.mxu0 %v186
    %210 = vmatpush.msra.mxu0 %v185
    %211 = vmatpush.msra.mxu0 %v184
    %212 = vmatpush.msra.mxu0 %v183
    %213 = vmatpush.msra.mxu0 %v182
    %214 = vmatpush.msra.mxu0 %v181
    %215 = vmatpush.msra.mxu0 %v180
    %216 = vmatmul.f32.gmra.mxu0 %v164
    %v217 = vpop.f32.mrf.mxu0
    %v218 = vadd.f32 %v198, %v217
    %219 = vmatmul.f32.gmra.mxu0 %v165
    %v220 = vpop.f32.mrf.mxu0
    %v221 = vadd.f32 %v198, %v220
    %222 = vmatmul.f32.gmra.mxu0 %v166
    %v223 = vpop.f32.mrf.mxu0
    %v224 = vadd.f32 %v198, %v223
    %225 = vmatmul.f32.gmra.mxu0 %v167
    %v226 = vpop.f32.mrf.mxu0
    %v227 = vadd.f32 %v198, %v226
    %228 = vmatmul.f32.gmra.mxu0 %v168
    %v229 = vpop.f32.mrf.mxu0
    %v230 = vadd.f32 %v198, %v229
    %231 = vmatmul.f32.gmra.mxu0 %v169
    %v232 = vpop.f32.mrf.mxu0
    %v233 = vadd.f32 %v198, %v232
    %234 = vmatmul.f32.gmra.mxu0 %v170
    %v235 = vpop.f32.mrf.mxu0
    %v236 = vadd.f32 %v198, %v235
    %237 = vmatmul.f32.gmra.mxu0 %v171
    %v238 = vpop.f32.mrf.mxu0
    %v239 = vadd.f32 %v198, %v238
    %240 = vmatmul.f32.gmra.mxu0 %v172
    %v241 = vpop.f32.mrf.mxu0
    %v242 = vadd.f32 %v198, %v241
    %243 = vmatmul.f32.gmra.mxu0 %v173
    %v244 = vpop.f32.mrf.mxu0
    %v245 = vadd.f32 %v198, %v244
    %246 = vmatmul.f32.gmra.mxu0 %v174
    %v247 = vpop.f32.mrf.mxu0
    %v248 = vadd.f32 %v198, %v247
    %249 = vmatmul.f32.gmra.mxu0 %v175
    %v250 = vpop.f32.mrf.mxu0
    %v251 = vadd.f32 %v198, %v250
    %252 = vmatmul.f32.gmra.mxu0 %v176
    %v253 = vpop.f32.mrf.mxu0
    %v254 = vadd.f32 %v198, %v253
    %255 = vmatmul.f32.gmra.mxu0 %v177
    %v256 = vpop.f32.mrf.mxu0
    %v257 = vadd.f32 %v198, %v256
    %258 = vmatmul.f32.gmra.mxu0 %v178
    %v259 = vpop.f32.mrf.mxu0
    %v260 = vadd.f32 %v198, %v259
    %261 = vmatmul.f32.gmra.mxu0 %v179
    %v262 = vpop.f32.mrf.mxu0
    %v263 = vadd.f32 %v198, %v262
    %264 = vdwg.mxu0
    %265 = vst [vmem:[#allocation2] sm:$0xff] %v218
    %266 = vst [vmem:[#allocation2 + $0x8] sm:$0xff] %v221
    %267 = vst [vmem:[#allocation2 + $0x10] sm:$0xff] %v224
    %268 = vst [vmem:[#allocation2 + $0x18] sm:$0xff] %v227
    %269 = vst [vmem:[#allocation2 + $0x20] sm:$0xff] %v230
    %270 = vst [vmem:[#allocation2 + $0x28] sm:$0xff] %v233
    %271 = vst [vmem:[#allocation2 + $0x30] sm:$0xff] %v236
    %272 = vst [vmem:[#allocation2 + $0x38] sm:$0xff] %v239
    %273 = vst [vmem:[#allocation2 + $0x40] sm:$0xff] %v242
    %274 = vst [vmem:[#allocation2 + $0x48] sm:$0xff] %v245
    %275 = vst [vmem:[#allocation2 + $0x50] sm:$0xff] %v248
    %276 = vst [vmem:[#allocation2 + $0x58] sm:$0xff] %v251
    %277 = vst [vmem:[#allocation2 + $0x60] sm:$0xff] %v254
    %278 = vst [vmem:[#allocation2 + $0x68] sm:$0xff] %v257
    %279 = vst [vmem:[#allocation2 + $0x70] sm:$0xff] %v260
    %280 = vst [vmem:[#allocation2 + $0x78] sm:$0xff] %v263
    // Predicated region
    $region22: #{hybrid_embed_forward.1} parent=1 // pred_check
      _
    $region23: #{hybrid_embed_forward.1} parent=1 // pred_check_branch
      %282 = sbr.rel (0) target = $region25
    $region24: #{hybrid_embed_forward.1} parent=1 // pred_region
      %284 = vsyncadd [#allocation3], 0
      %s285 = sshll.u32 [#allocation2], 4
      %s286 = int_to_ptr.vmem [resolvable:$true] %s285
      %s287 = sshll.u32 %s5, 4
      %s288 = int_to_ptr.hbm [resolvable:$true] %s287
      %293 = dma.vmem_to_hbm [thread:$0]  %s286, 2048, %s288, [#allocation3], 128, 128, 8
    $region25: #{hybrid_embed_forward.1} parent=1 // pred_fallthru
      _
    // Predicated region
    $region26: #{hybrid_embed_forward.1} parent=1 // pred_check
      _
    $region27: #{hybrid_embed_forward.1} parent=1 // pred_check_branch
      %295 = sbr.rel (0) target = $region29
    $region28: #{hybrid_embed_forward.1} parent=1 // pred_region
      %297 = dma.done [#allocation3], 2048
    $region29: #{hybrid_embed_forward.1} parent=1 // pred_fallthru
      _
    %298 = vsyncpa [#allocation3], 1

</llo_original>
